<compile_context>
chip_gen: v7x
topology: tpu7x:2x2x1
jax: 0.10.0
libtpu: 0.0.40
codegen_flags: <defaults>
</compile_context>

<pallas_src>
import math

import jax
import jax.numpy as jnp
from jax.experimental import pallas as pl
from jax.experimental.pallas import tpu as pltpu


_WR_VMEM_BUDGET = 28 * 1024 * 1024   # conservative: fits v7x (64 MiB/TC) with headroom
_VMEM_LIMIT = 48 * 1024 * 1024


def _binary(x):
    # torch.sign(x + 1e-6)
    return jnp.sign(x + 1e-6)


def _round_up(v, m):
    return ((v + m - 1) // m) * m


def _divisor_blocks(dim, align, cap):
    """Descending block sizes: multiples of `align` that divide `dim`, <= cap."""
    out = []
    b = (min(cap, dim) // align) * align
    while b >= align:
        if dim % b == 0:
            out.append(b)
        b -= align
    if not out:
        out = [dim]   # full extent is always a legal block
    return out


def _select_operand_dtype():
    """Narrowest MXU operand dtype that represents {-1, 0, +1} exactly here."""
    try:
        kind = jax.devices()[0].device_kind.lower()
    except Exception:
        return jnp.bfloat16
    if "v5" in kind or "v6" in kind:
        return jnp.int8             # v5e/v6e MXU: int8 at ~2x bf16 rate, 1-byte operands
    if "v7" in kind or "7x" in kind:
        return jnp.float8_e4m3fn    # v7x MXU: fp8 path (no integer MXU support)
    return jnp.bfloat16             # safe fallback for anything else


def _make_weight_resident_kernel(acc_dtype, has_bias):
    # Single matmul per batch tile; kt is grid-invariant (loaded once).
    if has_bias:
        def kernel(x_ref, kt_ref, b_ref, o_ref):
            acc = jnp.dot(x_ref[...], kt_ref[...], preferred_element_type=acc_dtype)
            o_ref[...] = acc.astype(o_ref.dtype) + b_ref[...]
    else:
        def kernel(x_ref, kt_ref, o_ref):
            acc = jnp.dot(x_ref[...], kt_ref[...], preferred_element_type=acc_dtype)
            o_ref[...] = acc.astype(o_ref.dtype)
    return kernel


def _make_tiled_kernel(acc_dtype, has_bias):
    # Accumulate directly into the f32 output block (resident across the K axis):
    # no separate VMEM scratch and no final copy.
    def body(x_ref, kt_ref, b_ref, o_ref):
        k = pl.program_id(2)

        @pl.when(k == 0)
        def _():
            o_ref[...] = jnp.zeros_like(o_ref)

        o_ref[...] += jnp.dot(x_ref[...], kt_ref[...],
                              preferred_element_type=acc_dtype).astype(o_ref.dtype)

        if has_bias:
            @pl.when(k == pl.num_programs(2) - 1)
            def _():
                o_ref[...] += b_ref[...]

    if has_bias:
        return body

    def kernel(x_ref, kt_ref, o_ref):
        body(x_ref, kt_ref, None, o_ref)
    return kernel


def bc_fc_forward(x, w_real, w_imag, bias=None, *, first_layer=False,
                  block_b=None, block_n=None, block_k=None, operand_dtype=None):
    """Pallas forward of BC_fc. x: (B, 2*fan_in); w_*: (fan_out, fan_in)."""
    B, two_fan_in = x.shape
    fan_out, fan_in = w_real.shape
    assert two_fan_in == 2 * fan_in, "input last dim must be 2*fan_in"
    two_fan_out = 2 * fan_out
    has_bias = bias is not None

    # ---- one-time weight prep (grid-invariant): binarize + build lane-dense K.T ----
    wr_b = _binary(w_real)
    wi_b = _binary(w_imag)
    kt = jnp.concatenate(
        [jnp.concatenate([wr_b.T, wi_b.T], axis=1),     # (fan_in, 2*fan_out)
         jnp.concatenate([-wi_b.T, wr_b.T], axis=1)],   # (fan_in, 2*fan_out)
        axis=0)                                         # (2*fan_in, 2*fan_out)

    # ---- operand dtype + pre-binarized x (wrapper-side, streamed narrow) ----
    if first_layer:
        # TODO(synk): first_layer could use a bf16 hi+lo split matmul for ~2-3x MXU
        # throughput; kept f32 for exactness against the module semantics.
        op_dtype = jnp.dtype(jnp.float32)
        x_in = x.astype(jnp.float32)
    else:
        op_dtype = jnp.dtype(operand_dtype if operand_dtype is not None
                             else _select_operand_dtype())
        x_in = _binary(x)

    is_8bit = op_dtype.itemsize == 1

    # ---- padding: lane-dense N, 128-aligned K, 8-aligned B ----
    B_pad = _round_up(B, 8)
    K_pad = _round_up(two_fan_in, 128)
    N_pad = _round_up(two_fan_out, 128)

    # 8-bit operands pack 32 sublanes; fall back to bf16 if the batch tile
    # cannot be 32-aligned.
    if is_8bit and (B_pad % 32 != 0 or (block_b is not None and block_b % 32 != 0)):
        op_dtype = jnp.dtype(jnp.bfloat16)
        is_8bit = False
    acc_dtype = jnp.int32 if jnp.issubdtype(op_dtype, jnp.integer) else jnp.float32
    align_b = 32 if is_8bit else 8

    if B_pad != B or K_pad != two_fan_in:
        x_in = jnp.pad(x_in, ((0, B_pad - B), (0, K_pad - two_fan_in)))
    if K_pad != two_fan_in or N_pad != two_fan_out:
        kt = jnp.pad(kt, ((0, K_pad - two_fan_in), (0, N_pad - two_fan_out)))
    x_in = x_in.astype(op_dtype)   # {-1,0,+1} exact in bf16 / int8 / fp8
    kt = kt.astype(op_dtype)

    if has_bias:
        b_row = jnp.pad(bias.astype(jnp.float32),
                        (0, N_pad - two_fan_out)).reshape(1, N_pad)

    op_size = op_dtype.itemsize
    bb_cands = ([block_b] if block_b is not None
                else _divisor_blocks(B_pad, align_b, 1024))

    def _wr_bytes(bb):
        # double-buffered x / out blocks + double-buffered (but fetched-once) kt
        b = (2 * K_pad * N_pad * op_size + 2 * bb * K_pad * op_size
             + 2 * bb * N_pad * 4)
        if has_bias:
            b += 2 * N_pad * 4
        return b

    # ---- weight-resident fast path: whole K.T stays in VMEM, grid = (B/bb,) ----
    weight_resident = block_n is None and block_k is None
    chosen_bb = None
    if weight_resident:
        for bb in bb_cands:
            if B_pad % bb == 0 and _wr_bytes(bb) <= _WR_VMEM_BUDGET:
                chosen_bb = bb
                break
        weight_resident = chosen_bb is not None

    if weight_resident:
        # Split the batch into >=2 parallel blocks when possible so v7x megacore
        # can shard the grid across its two TensorCores.
        if block_b is None and B_pad // chosen_bb == 1 and B_pad >= 64:
            smaller = [b for b in bb_cands if b <= B_pad // 2]
            if smaller:
                chosen_bb = smaller[0]

        grid = (B_pad // chosen_bb,)
        kernel = _make_weight_resident_kernel(acc_dtype, has_bias)
        in_specs = [
            pl.BlockSpec((chosen_bb, K_pad), lambda i: (i, 0)),
            pl.BlockSpec((K_pad, N_pad), lambda i: (0, 0)),   # constant -> DMA'd once
        ]
        args = [x_in, kt]
        if has_bias:
            in_specs.append(pl.BlockSpec((1, N_pad), lambda i: (0, 0)))
            args.append(b_row)

        out_padded = pl.pallas_call(
            kernel,
            out_shape=jax.ShapeDtypeStruct((B_pad, N_pad), jnp.float32),
            grid_spec=pltpu.PrefetchScalarGridSpec(
                num_scalar_prefetch=0,
                grid=grid,
                in_specs=in_specs,
                out_specs=pl.BlockSpec((chosen_bb, N_pad), lambda i: (i, 0)),
            ),
            compiler_params=pltpu.CompilerParams(
                dimension_semantics=("parallel",),
                vmem_limit_bytes=_VMEM_LIMIT),
        )(*args)
    else:
        # ---- tiled fallback: (B, N, K) grid, K-reduction into the resident output ----
        bb = block_b if block_b is not None else _divisor_blocks(B_pad, align_b, 512)[0]
        bn = block_n if block_n is not None else _divisor_blocks(N_pad, 128, 512)[0]
        bk = block_k if block_k is not None else _divisor_blocks(K_pad, 128, 512)[0]
        assert B_pad % bb == 0 and N_pad % bn == 0 and K_pad % bk == 0

        grid = (B_pad // bb, N_pad // bn, K_pad // bk)
        kernel = _make_tiled_kernel(acc_dtype, has_bias)
        in_specs = [
            pl.BlockSpec((bb, bk), lambda i, j, k: (i, k)),
            pl.BlockSpec((bk, bn), lambda i, j, k: (k, j)),
        ]
        args = [x_in, kt]
        if has_bias:
            in_specs.append(pl.BlockSpec((1, bn), lambda i, j, k: (0, j)))
            args.append(b_row)

        out_padded = pl.pallas_call(
            kernel,
            out_shape=jax.ShapeDtypeStruct((B_pad, N_pad), jnp.float32),
            grid_spec=pltpu.PrefetchScalarGridSpec(
                num_scalar_prefetch=0,
                grid=grid,
                in_specs=in_specs,
                out_specs=pl.BlockSpec((bb, bn), lambda i, j, k: (i, j)),
            ),
            compiler_params=pltpu.CompilerParams(
                dimension_semantics=("parallel", "parallel", "arbitrary"),
                vmem_limit_bytes=_VMEM_LIMIT),
        )(*args)

    return out_padded[:B, :two_fan_out]


def bc_fc_reference(x, w_real, w_imag, bias=None, first_layer=False):
    """Pure-JAX reference mirroring the PyTorch forward."""
    if not first_layer:
        x = _binary(x)
    wr = _binary(w_real)
    wi = _binary(w_imag)
    k_real = jnp.concatenate([wr, -wi], axis=-1)
    k_imag = jnp.concatenate([wi, wr], axis=-1)
    k_complex = jnp.concatenate([k_real, k_imag], axis=0)   # (2*fan_out, 2*fan_in)
    out = jnp.dot(x, k_complex.T, precision=jax.lax.Precision.HIGHEST)
    if bias is not None:
        out = out + bias[None, :]
    return out


if __name__ == "__main__":
    key = jax.random.PRNGKey(0)

    def make_inputs(key, B, fan_in, fan_out, with_bias):
        kx, kr, ki, kb = jax.random.split(key, 4)
        # nn.init.xavier_uniform_(gain=4.0)
        bound = 4.0 * math.sqrt(6.0 / (fan_in + fan_out))
        w_real = jax.random.uniform(kr, (fan_out, fan_in), jnp.float32, -bound, bound)
        w_imag = jax.random.uniform(ki, (fan_out, fan_in), jnp.float32, -bound, bound)
        x = jax.random.normal(kx, (B, 2 * fan_in), dtype=jnp.float32)
        bias = None
        if with_bias:
            bb = 1.0 / math.sqrt(fan_in + fan_out)
            bias = jax.random.uniform(kb, (2 * fan_out,), jnp.float32, -bb, bb)
        return x, w_real, w_imag, bias

    tests = [
        # name,          B, fan_in, fan_out, first_layer, bias, forced blocks
        ("small_wres",    8,  64,  32, False, False, {}),
        ("narrow_dtype", 64, 128,  40, False, True,  {}),
        ("tiled_path",   64, 128,  40, False, True,
         dict(block_b=32, block_n=128, block_k=128)),
        ("first_layer",  16,  64,  32, True,  False, {}),
    ]

    for name, B, fi, fo, fl, wb, blocks in tests:
        key, sub = jax.random.split(key)
        x, wr, wi, b = make_inputs(sub, B, fi, fo, wb)
        out = jax.block_until_ready(
            bc_fc_forward(x, wr, wi, b, first_layer=fl, **blocks))
        ref = bc_fc_reference(x, wr, wi, b, first_layer=fl)
        assert out.shape == (B, 2 * fo), f"bad shape in {name}"
        # Binarized paths are exact (integer sums, +/-1 operands exact in
        # bf16/int8/fp8); the first_layer f32 path allows MXU rounding slack.
        atol = 0.35 if fl else 1e-3
        rtol = 2e-2 if fl else 1e-3
        assert jnp.allclose(out, ref, atol=atol, rtol=rtol), f"mismatch in {name}"

    print("KERNEL_OK")
</pallas_src>

<mosaic_0001>
module attributes {stable_mosaic.version = 11 : i64} {
  func.func @kernel(%arg0: i32, %arg1: memref<8x128xbf16, #tpu.memory_space<vmem>>, %arg2: memref<128x128xbf16, #tpu.memory_space<vmem>>, %arg3: memref<8x128xf32, #tpu.memory_space<vmem>>) attributes {dimension_semantics = [#tpu.dimension_semantics<parallel>], iteration_bounds = array<i64: 1>, scalar_prefetch = 0 : i64, scratch_operands = 0 : i64, tpu.core_type = #tpu.core_type<tc>, window_params = [{transform_indices = @transform_0, window_bounds = array<i64: 8, 128>}, {pipeline_mode = #tpu.pipeline_mode<synchronous>, transform_indices = @transform_1, window_bounds = array<i64: 128, 128>}, {transform_indices = @transform_2, window_bounds = array<i64: 8, 128>}]} {
    %c0 = arith.constant 0 : index
    %c0_0 = arith.constant 0 : index
    %0 = vector.load %arg1[%c0, %c0_0] : memref<8x128xbf16, #tpu.memory_space<vmem>>, vector<8x128xbf16>
    %c0_1 = arith.constant 0 : index
    %c0_2 = arith.constant 0 : index
    %1 = vector.load %arg2[%c0_1, %c0_2] : memref<128x128xbf16, #tpu.memory_space<vmem>>, vector<128x128xbf16>
    %cst = arith.constant dense<0.000000e+00> : vector<8x128xf32>
    %2 = tpu.matmul %0, %1, %cst {dimension_numbers = #tpu.dot_dimension_numbers<[1], [0], [0], [1], [0, 0, 1, 1], [], []>} : vector<8x128xbf16>, vector<128x128xbf16>, vector<8x128xf32> -> vector<8x128xf32>
    %c0_3 = arith.constant 0 : index
    %c0_4 = arith.constant 0 : index
    %3 = vector.load %arg3[%c0_3, %c0_4] : memref<8x128xf32, #tpu.memory_space<vmem>>, vector<8x128xf32>
    tpu.vector_store %arg3[%c0_3, %c0_4], %2 {strides = array<i32>} : memref<8x128xf32, #tpu.memory_space<vmem>>, vector<8x128xf32>,
    return
  }
  func.func @transform_0(%arg0: i32) -> (i32, i32) {
    %c0_i32 = arith.constant 0 : i32
    %c0_i32_0 = arith.constant 0 : i32
    return %arg0, %c0_i32 : i32, i32
  }
  func.func @transform_1(%arg0: i32) -> (i32, i32) {
    %c0_i32 = arith.constant 0 : i32
    %c0_i32_0 = arith.constant 0 : i32
    %c0_i32_1 = arith.constant 0 : i32
    return %c0_i32, %c0_i32_0 : i32, i32
  }
  func.func @transform_2(%arg0: i32) -> (i32, i32) {
    %c0_i32 = arith.constant 0 : i32
    %c0_i32_0 = arith.constant 0 : i32
    return %arg0, %c0_i32 : i32, i32
  }
}

</mosaic_0001>

<llo_original>
// kernel: tpu_custom_call.1
$region0: #{tpu_custom_call.1}
  #allocation0 [shape = 'u32[]', space=smem, size = 0x4, offset = 0x4, fixed_abs, tag = 'smem constant byte address 0x4 - core index']
  #allocation1 [shape = 'u32[144,128]{1,0:T(1,128)}', space=vmem, size = 0x12000, scoped, tag = 'internal scratch']
  %s0 = inlined_call_operand.hbm [shape: bf16[8,128], index: 0, kind: input, shape index: {}]
  %s1 = inlined_call_operand.hbm [shape: bf16[128,128], index: 1, kind: input, shape index: {}]
  %s2 = inlined_call_operand.hbm [shape: f32[8,128], index: 2, kind: output, shape index: {}]
  %s3 = sld [smem:[#allocation0]]
  $region26: #{tpu_custom_call.1} parent=0
    _
  %s5 = ssub.s32 1, %s3
  %s6 = scalar_select 0, %s5, %s3
  $region1: #{tpu_custom_call.1} parent=0
    #allocation2 [shape = 'u8[2048]{0}', space=vmem, size = 0x800, scoped, tag = 'input window, operand 0, single buffered']
    #allocation3 [shape = 's32[1]{0}', space=sflag, size = 0x4, scoped, tag = 'scoped memory for tpu_custom_call.1']
    #allocation4 [shape = 's32[1]{0}', space=sflag, size = 0x4, scoped, tag = 'scoped memory for tpu_custom_call.1']
    #allocation5 [shape = 'u8[32768]{0}', space=vmem, size = 0x8000, scoped, tag = 'input window, operand 1, single buffered']
    #allocation6 [shape = 's32[1]{0}', space=sflag, size = 0x4, scoped, tag = 'scoped memory for tpu_custom_call.1']
    #allocation7 [shape = 'u8[4096]{0}', space=vmem, size = 0x1000, scoped, tag = 'output window, operand 0, single buffered']
    %7 = vsyncpa [#allocation3], 0
    %8 = vsyncpa [#allocation6], 0
    %9 = vsyncpa [#allocation4], 0
    // Predicated region
    $region2: #{tpu_custom_call.1} parent=1 // pred_check
      _
    $region3: #{tpu_custom_call.1} parent=1 // pred_check_branch
      %11 = sbr.rel (0) target = $region5
    $region4: #{tpu_custom_call.1} parent=1 // pred_region
      %s13 = ssub.s32 64, 64
      %14 = vsyncadd [#allocation3], %s13
      %s16 = sshll.u32 [#allocation2], 4
      %s17 = int_to_ptr.vmem [resolvable:$true] %s16
      %19 = dma.hbm_to_vmem [thread:$0]  %s0, 64, %s17, [#allocation3]
    $region5: #{tpu_custom_call.1} parent=1 // pred_fallthru
      _
    // Predicated region
    $region6: #{tpu_custom_call.1} parent=1 // pred_check
      _
    $region7: #{tpu_custom_call.1} parent=1 // pred_check_branch
      %21 = sbr.rel (0) target = $region9
    $region8: #{tpu_custom_call.1} parent=1 // pred_region
      %s23 = ssub.s32 1024, 1024
      %24 = vsyncadd [#allocation6], %s23
      %s25 = sshll.u32 [#allocation5], 4
      %s26 = int_to_ptr.vmem [resolvable:$true] %s25
      %31 = dma.hbm_to_vmem [thread:$0]  %s1, 1024, %s26, [#allocation6], 64, 64, 4
    $region9: #{tpu_custom_call.1} parent=1 // pred_fallthru
      _
    // Predicated region
    $region10: #{tpu_custom_call.1} parent=1 // pred_check
      _
    $region11: #{tpu_custom_call.1} parent=1 // pred_check_branch
      %33 = sbr.rel (0) target = $region13
    $region12: #{tpu_custom_call.1} parent=1 // pred_region
      %34 = dma.done [#allocation3], 64
    $region13: #{tpu_custom_call.1} parent=1 // pred_fallthru
      _
    // Predicated region
    $region14: #{tpu_custom_call.1} parent=1 // pred_check
      _
    $region15: #{tpu_custom_call.1} parent=1 // pred_check_branch
      %36 = sbr.rel (0) target = $region17
    $region16: #{tpu_custom_call.1} parent=1 // pred_region
      %37 = dma.done [#allocation6], 1024
    $region17: #{tpu_custom_call.1} parent=1 // pred_fallthru
      _
    %v39 = vld [vmem:[#allocation2] sm:$0xf]
    %v40 = vld [vmem:[#allocation5] sm:$0xf]
    %v41 = vld [vmem:[#allocation5 + $0x4] sm:$0xf]
    %v42 = vld [vmem:[#allocation5 + $0x8] sm:$0xf]
    %v43 = vld [vmem:[#allocation5 + $0xc] sm:$0xf]
    %v44 = vld [vmem:[#allocation5 + $0x10] sm:$0xf]
    %v45 = vld [vmem:[#allocation5 + $0x14] sm:$0xf]
    %v46 = vld [vmem:[#allocation5 + $0x18] sm:$0xf]
    %v47 = vld [vmem:[#allocation5 + $0x1c] sm:$0xf]
    %v48 = vld [vmem:[#allocation5 + $0x20] sm:$0xf]
    %v49 = vld [vmem:[#allocation5 + $0x24] sm:$0xf]
    %v50 = vld [vmem:[#allocation5 + $0x28] sm:$0xf]
    %v51 = vld [vmem:[#allocation5 + $0x2c] sm:$0xf]
    %v52 = vld [vmem:[#allocation5 + $0x30] sm:$0xf]
    %v53 = vld [vmem:[#allocation5 + $0x34] sm:$0xf]
    %v54 = vld [vmem:[#allocation5 + $0x38] sm:$0xf]
    %v55 = vld [vmem:[#allocation5 + $0x3c] sm:$0xf]
    %v72 = vunpack.c.l.b16 %v40
    %v73 = vunpack.c.l.b16 %v41
    %v74 = vunpack.c.l.b16 %v42
    %v75 = vunpack.c.l.b16 %v43
    %v76 = vunpack.c.l.b16 %v44
    %v77 = vunpack.c.l.b16 %v45
    %v78 = vunpack.c.l.b16 %v46
    %v79 = vunpack.c.l.b16 %v47
    %v80 = vunpack.c.l.b16 %v48
    %v81 = vunpack.c.l.b16 %v49
    %v82 = vunpack.c.l.b16 %v50
    %v83 = vunpack.c.l.b16 %v51
    %v84 = vunpack.c.l.b16 %v52
    %v85 = vunpack.c.l.b16 %v53
    %v86 = vunpack.c.l.b16 %v54
    %v87 = vunpack.c.l.b16 %v55
    %v88 = vpack.c.b16 %v73, %v72
    %v89 = vpack.c.b16 %v75, %v74
    %v90 = vpack.c.b16 %v77, %v76
    %v91 = vpack.c.b16 %v79, %v78
    %v92 = vpack.c.b16 %v81, %v80
    %v93 = vpack.c.b16 %v83, %v82
    %v94 = vpack.c.b16 %v85, %v84
    %v95 = vpack.c.b16 %v87, %v86
    %104 = vmatprep.subr.bf16.mxu0 0
    %105 = vmatpush1.bf16.msra.mxu0 %v88
    %106 = vmatprep.subr.bf16.mxu0 0
    %107 = vmatpush1.bf16.msra.mxu0 %v89
    %108 = vmatprep.subr.bf16.mxu0 0
    %109 = vmatpush1.bf16.msra.mxu0 %v90
    %110 = vmatprep.subr.bf16.mxu0 0
    %111 = vmatpush1.bf16.msra.mxu0 %v91
    %112 = vmatprep.subr.bf16.mxu0 0
    %113 = vmatpush1.bf16.msra.mxu0 %v92
    %114 = vmatprep.subr.bf16.mxu0 0
    %115 = vmatpush1.bf16.msra.mxu0 %v93
    %116 = vmatprep.subr.bf16.mxu0 0
    %117 = vmatpush1.bf16.msra.mxu0 %v94
    %118 = vmatprep.subr.bf16.mxu0 0
    %119 = vmatpush1.bf16.msra.mxu0 %v95
    %120 = vmatprep.subr.bf16.mxu0 0
    %121 = vmatpush1.bf16.msra.mxu0 0
    %122 = vmatprep.subr.bf16.mxu0 0
    %123 = vmatpush1.bf16.msra.mxu0 0
    %124 = vmatprep.subr.bf16.mxu0 0
    %125 = vmatpush1.bf16.msra.mxu0 0
    %126 = vmatprep.subr.bf16.mxu0 0
    %127 = vmatpush1.bf16.msra.mxu0 0
    %128 = vmatprep.subr.bf16.mxu0 0
    %129 = vmatpush1.bf16.msra.mxu0 0
    %130 = vmatprep.subr.bf16.mxu0 0
    %131 = vmatpush1.bf16.msra.mxu0 0
    %132 = vmatprep.subr.bf16.mxu0 0
    %133 = vmatpush1.bf16.msra.mxu0 0
    %134 = vmatprep.subr.bf16.mxu0 0
    %135 = vmatpush1.bf16.msra.mxu0 0
    %136 = vmatprep.mubr.bf16.mxu0 0
    %137 = vmatmul.mubr.bf16.gmra.mrb[0].mxu0 %v39
    %v138 = vpop.f32.mrb[0].mxu0
    %v139 = vadd.f32 0.0, %v138
    %v140 = vpop.f32.mrb[0].mxu0
    %v141 = vpop.f32.mrb[0].mxu0
    %v142 = vpop.f32.mrb[0].mxu0
    %143 = vdwg.mxu0
    %144 = vst [vmem:[#allocation7] sm:$0xff] %v139
    // Predicated region
    $region18: #{tpu_custom_call.1} parent=1 // pred_check
      _
    $region19: #{tpu_custom_call.1} parent=1 // pred_check_branch
      %146 = sbr.rel (0) target = $region21
    $region20: #{tpu_custom_call.1} parent=1 // pred_region
      %s148 = ssub.s32 128, 128
      %149 = vsyncadd [#allocation4], %s148
      %s151 = sshll.u32 [#allocation7], 4
      %s152 = int_to_ptr.vmem [resolvable:$true] %s151
      %154 = dma.vmem_to_hbm [thread:$0]  %s152, 128, %s2, [#allocation4]
    $region21: #{tpu_custom_call.1} parent=1 // pred_fallthru
      _
    // Predicated region
    $region22: #{tpu_custom_call.1} parent=1 // pred_check
      _
    $region23: #{tpu_custom_call.1} parent=1 // pred_check_branch
      %156 = sbr.rel (0) target = $region25
    $region24: #{tpu_custom_call.1} parent=1 // pred_region
      %157 = dma.done [#allocation4], 128
    $region25: #{tpu_custom_call.1} parent=1 // pred_fallthru
      _
    %158 = vsyncpa [#allocation3], 1
    %159 = vsyncpa [#allocation6], 1
    %160 = vsyncpa [#allocation4], 1

</llo_original>
